<compile_context>
chip_gen: v7x
topology: tpu7x:2x2x1
jax: 0.10.0
libtpu: 0.0.40
codegen_flags: <defaults>
</compile_context>

<pallas_src>
import functools

import jax
import jax.numpy as jnp
from jax.experimental import pallas as pl
from jax.experimental.pallas import tpu as pltpu

_LANES = 128
_SUBLANES = 8
# Cap the f32 working tile per input at 16 MiB (diminishing returns beyond).
_MAX_F32_TILE_BYTES = 16 << 20


def _dice_kernel(o_ref, t_ref, p_ref, *, rows, t_rows, kps, need_mask):
    # o_ref, t_ref: (1, C, t_rows, 128) tiles of one image (any dtype).
    # p_ref:        (1, 1, 2, C, 128) lane-wide partials for this (split, image):
    #               [0] = sum(o * t), [1] = sum(o + t).
    k = pl.program_id(2)

    @pl.when(k == 0)
    def _init():
        p_ref[...] = jnp.zeros_like(p_ref)

    o = o_ref[0].astype(jnp.float32)          # (C, t_rows, 128)
    t = t_ref[0].astype(jnp.float32)

    if need_mask:
        # Intended global row-block index of this step (the BlockSpec index_map
        # clamps to the last valid block; rows belonging to a clamped/partial
        # block are zero-selected here so they contribute nothing).
        s = pl.program_id(0)
        g = s * kps + k
        row0 = g * t_rows
        local = jax.lax.broadcasted_iota(jnp.int32, o.shape, 1)
        valid = (row0 + local) < rows
        o = jnp.where(valid, o, 0.0)
        t = jnp.where(valid, t, 0.0)

    p_ref[0, 0, 0, :, :] += jnp.sum(o * t, axis=1)   # (C, 128) intersection
    p_ref[0, 0, 1, :, :] += jnp.sum(o + t, axis=1)   # (C, 128) denominator


def _choose_row_tile(num_classes, rows, o_isize, t_isize, vmem_cap):
    """Row-tile size sized off the real per-step VMEM footprint.

    Footprint per row of tile: 2x double-buffered input tiles (summed itemsizes)
    plus ~4 full-tile f32 temporaries (casts, o*t, o+t).
    """
    per_row = num_classes * _LANES * (2 * (o_isize + t_isize) + 4 * 4)
    budget = int(0.55 * vmem_cap)
    max_rows = max(_SUBLANES, budget // max(per_row, 1))
    cap_rows = max(_SUBLANES, _MAX_F32_TILE_BYTES // (num_classes * _LANES * 4))
    max_rows = min(max_rows, cap_rows)
    if rows <= max_rows:
        # Whole image in one block: full-extent second-last dim is always legal.
        return rows
    return (max_rows // _SUBLANES) * _SUBLANES


def _dice_per_image_jnp(outputs, targets):
    # Pure-JAX reference (also the small-problem fallback).
    o = outputs.astype(jnp.float32)
    t = targets.astype(jnp.float32)
    nom = 2.0 * jnp.sum(o * t, axis=(2, 3))
    den = jnp.sum(o, axis=(2, 3)) + jnp.sum(t, axis=(2, 3))
    eps = jnp.where(den == 0.0, 1e-07, 0.0)
    res = (nom + eps) / (den + eps)
    return res.mean(axis=0)


def dice_per_image_pallas(outputs, targets, *, min_pallas_bytes=512 * 1024,
                          _force_row_tile=None):
    """Per-class dice averaged over the batch — Pallas version of dice_per_image.

    Dtype contract: pass outputs/targets in their native (narrow) dtypes, e.g.
    bf16 outputs and int8/bool targets — the kernel casts to f32 internally and
    the HBM traffic (the roofline on all chips) shrinks proportionally. Do NOT
    astype in the caller just to "help" the kernel.
    """
    N, C, H, W = outputs.shape
    hw = H * W
    o_isize = jnp.dtype(outputs.dtype).itemsize
    t_isize = jnp.dtype(targets.dtype).itemsize

    total_bytes = N * C * hw * (o_isize + t_isize)
    if total_bytes < min_pallas_bytes and _force_row_tile is None:
        # Per-call / per-grid-step overhead dominates tiny problems; let XLA fuse.
        return _dice_per_image_jnp(outputs, targets)

    o = outputs.reshape(N, C, hw)
    t = targets.reshape(N, C, hw)
    if hw % _LANES != 0:
        # Rare fallback: H*W not a lane multiple. Zero padding is exact for all
        # accumulated sums.
        # TODO(synk): could be removed with a (1, C, chunk) 3-D block + flat-index mask.
        hw_pad = pl.cdiv(hw, _LANES) * _LANES
        pad = ((0, 0), (0, 0), (0, hw_pad - hw))
        o = jnp.pad(o, pad)
        t = jnp.pad(t, pad)
        hw = hw_pad
    rows = hw // _LANES
    o = o.reshape(N, C, rows, _LANES)
    t = t.reshape(N, C, rows, _LANES)

    try:
        vmem_cap = int(pltpu.get_tpu_info().vmem_capacity_bytes)
    except Exception:
        vmem_cap = 64 << 20   # conservative: v7x per-TC VMEM

    if _force_row_tile is not None:
        t_rows = int(_force_row_tile)
    else:
        t_rows = _choose_row_tile(C, rows, o_isize, t_isize, vmem_cap)
    n_k = pl.cdiv(rows, t_rows)

    # 2-way split of the row-block axis keeps both v7x TensorCores streaming when
    # the batch axis alone can't (N == 1 or odd). Harmless on single-TC chips.
    n_split = 2 if (n_k >= 2 and N % 2 == 1) else 1
    kps = pl.cdiv(n_k, n_split)

    need_mask = (rows % t_rows != 0) or (n_split * kps != n_k)

    if n_split * kps == n_k:
        in_idx = lambda s, n, k: (n, 0, s * kps + k, 0)
    else:
        # Clamp so no block index ever exceeds the array; the redundant clamped
        # block is zero-masked in the kernel (its intended rows are >= rows).
        in_idx = lambda s, n, k: (n, 0, jnp.minimum(s * kps + k, n_k - 1), 0)

    blk_elems = C * t_rows * _LANES
    vmem_need = (2 * blk_elems * (o_isize + t_isize)   # double-buffered input tiles
                 + 4 * blk_elems * 4                   # f32 cast/product/sum temporaries
                 + 2 * 2 * C * _LANES * 4)             # resident partials block (x2 buf)
    vmem_limit = int(min(vmem_cap, max(32 << 20, int(1.3 * vmem_need))))

    cost = pl.CostEstimate(
        flops=4 * N * C * hw,            # mul + add + 2 accumulating adds per pixel
        transcendentals=0,
        bytes_accessed=(N * C * hw * (o_isize + t_isize)
                        + n_split * N * 2 * C * _LANES * 4),
    )

    kernel = functools.partial(_dice_kernel, rows=rows, t_rows=t_rows,
                               kps=kps, need_mask=need_mask)

    partials = pl.pallas_call(
        kernel,
        out_shape=jax.ShapeDtypeStruct((n_split, N, 2, C, _LANES), jnp.float32),
        grid_spec=pltpu.PrefetchScalarGridSpec(
            num_scalar_prefetch=0,
            grid=(n_split, N, kps),
            in_specs=[
                pl.BlockSpec((1, C, t_rows, _LANES), in_idx),
                pl.BlockSpec((1, C, t_rows, _LANES), in_idx),
            ],
            out_specs=pl.BlockSpec((1, 1, 2, C, _LANES),
                                   lambda s, n, k: (s, n, 0, 0, 0)),
        ),
        compiler_params=pltpu.CompilerParams(
            dimension_semantics=("parallel", "parallel", "arbitrary"),
            vmem_limit_bytes=vmem_limit,
        ),
        cost_estimate=cost,
    )(o, t)

    # Tiny XLA epilogue: fold the split and lane axes, then the dice math.
    sums = jnp.sum(partials, axis=(0, 4))          # (N, 2, C)
    inter = sums[:, 0, :]
    den = sums[:, 1, :]
    nom = 2.0 * inter
    eps = jnp.where(den == 0.0, jnp.float32(1e-07), jnp.float32(0.0))
    dice = (nom + eps) / (den + eps)               # (N, C)
    return dice.mean(axis=0)                       # (C,) — matches res.mean(dim=0)


def dice_loss_per_image(outputs, targets, **kwargs):
    """Forward of DiceLossPerImage: 1 - dice_per_image(outputs, targets).mean()."""
    return 1.0 - dice_per_image_pallas(outputs, targets, **kwargs).mean()


def _dice_loss_ref(outputs, targets):
    return 1.0 - _dice_per_image_jnp(outputs, targets).mean()


if __name__ == "__main__":
    root = jax.random.PRNGKey(0)

    # (N, C, H, W, forced row tile) — small shapes exercising every code path:
    cases = [
        (2, 4, 16, 16, None),   # baseline: one block per image, no masking
        (1, 4, 48, 48, 8),      # ragged rows + odd n_k + 2-way TC split (N odd)
        (2, 4, 40, 32, 8),      # ragged rows, single split (N even)
        (2, 4, 12, 12, None),   # H*W % 128 != 0 -> lane-pad fallback path
    ]

    for idx, (N, C, H, W, force) in enumerate(cases):
        k1, k2 = jax.random.split(jax.random.fold_in(root, idx))
        # "outputs" are probability-like floats, "targets" are binary masks.
        outputs = jax.nn.sigmoid(jax.random.normal(k1, (N, C, H, W), dtype=jnp.float32))
        targets = (jax.random.uniform(k2, (N, C, H, W)) > 0.7).astype(jnp.float32)

        # min_pallas_bytes=0 forces the Pallas path even at these tiny sizes.
        loss = jax.block_until_ready(
            dice_loss_per_image(outputs, targets, min_pallas_bytes=0,
                                _force_row_tile=force))
        ref = jax.block_until_ready(_dice_loss_ref(outputs, targets))
        assert jnp.allclose(loss, ref, rtol=1e-5, atol=1e-6), (idx, loss, ref)

    print("KERNEL_OK")
</pallas_src>

<mosaic_0001>
module attributes {stable_mosaic.version = 11 : i64} {
  func.func @_dice_kernel(%arg0: i32, %arg1: i32, %arg2: i32, %arg3: memref<1x4x2x128xf32, #tpu.memory_space<vmem>>, %arg4: memref<1x4x2x128xf32, #tpu.memory_space<vmem>>, %arg5: memref<1x1x2x4x128xf32, #tpu.memory_space<vmem>>) attributes {dimension_semantics = [#tpu.dimension_semantics<parallel>, #tpu.dimension_semantics<parallel>, #tpu.dimension_semantics<arbitrary>], iteration_bounds = array<i64: 1, 2, 1>, scalar_prefetch = 0 : i64, scratch_operands = 0 : i64, tpu.core_type = #tpu.core_type<tc>, window_params = [{transform_indices = @transform_0, window_bounds = array<i64: 1, 4, 2, 128>}, {transform_indices = @transform_1, window_bounds = array<i64: 1, 4, 2, 128>}, {transform_indices = @transform_2, window_bounds = array<i64: 1, 1, 2, 4, 128>}]} {
    %c0_i32 = arith.constant 0 : i32
    %0 = arith.cmpi eq, %arg2, %c0_i32 : i32
    %1 = arith.extui %0 : i1 to i32
    %c0_i32_0 = arith.constant 0 : i32
    %2 = arith.cmpi ne, %1, %c0_i32_0 : i32
    scf.if %2 {
      %cst_28 = arith.constant 0.000000e+00 : f32
      %23 = vector.broadcast %cst_28 : f32 to vector<1x1x2x4x128xf32>
      %c0_29 = arith.constant 0 : index
      %c0_30 = arith.constant 0 : index
      %c0_31 = arith.constant 0 : index
      %c0_32 = arith.constant 0 : index
      %c0_33 = arith.constant 0 : index
      %24 = vector.load %arg5[%c0_29, %c0_30, %c0_31, %c0_32, %c0_33] : memref<1x1x2x4x128xf32, #tpu.memory_space<vmem>>, vector<1x1x2x4x128xf32>
      tpu.vector_store %arg5[%c0_29, %c0_30, %c0_31, %c0_32, %c0_33], %23 {strides = array<i32>} : memref<1x1x2x4x128xf32, #tpu.memory_space<vmem>>, vector<1x1x2x4x128xf32>,
    } else {
    }
    %c0 = arith.constant 0 : index
    %c0_1 = arith.constant 0 : index
    %c0_2 = arith.constant 0 : index
    %c0_3 = arith.constant 0 : index
    %3 = vector.load %arg3[%c0, %c0_1, %c0_2, %c0_3] : memref<1x4x2x128xf32, #tpu.memory_space<vmem>>, vector<1x4x2x128xf32>
    %4 = vector.shape_cast %3 : vector<1x4x2x128xf32> to vector<4x2x128xf32>
    %c0_4 = arith.constant 0 : index
    %c0_5 = arith.constant 0 : index
    %c0_6 = arith.constant 0 : index
    %c0_7 = arith.constant 0 : index
    %5 = vector.load %arg4[%c0_4, %c0_5, %c0_6, %c0_7] : memref<1x4x2x128xf32, #tpu.memory_space<vmem>>, vector<1x4x2x128xf32>
    %6 = vector.shape_cast %5 : vector<1x4x2x128xf32> to vector<4x2x128xf32>
    %c0_8 = arith.constant 0 : index
    %c0_9 = arith.constant 0 : index
    %c0_10 = arith.constant 0 : index
    %c0_11 = arith.constant 0 : index
    %c0_12 = arith.constant 0 : index
    %7 = vector.load %arg5[%c0_8, %c0_9, %c0_10, %c0_11, %c0_12] : memref<1x1x2x4x128xf32, #tpu.memory_space<vmem>>, vector<1x1x1x4x128xf32>
    %8 = vector.shape_cast %7 : vector<1x1x1x4x128xf32> to vector<4x128xf32>
    %9 = arith.mulf %4, %6 : vector<4x2x128xf32>
    %cst = arith.constant dense<0.000000e+00> : vector<4x128xf32>
    %10 = vector.multi_reduction <add>, %9, %cst [1] : vector<4x2x128xf32> to vector<4x128xf32>
    %11 = arith.addf %8, %10 : vector<4x128xf32>
    %c0_13 = arith.constant 0 : index
    %c0_14 = arith.constant 0 : index
    %c0_15 = arith.constant 0 : index
    %c0_16 = arith.constant 0 : index
    %c0_17 = arith.constant 0 : index
    %12 = vector.load %arg5[%c0_13, %c0_14, %c0_15, %c0_16, %c0_17] : memref<1x1x2x4x128xf32, #tpu.memory_space<vmem>>, vector<1x1x1x4x128xf32>
    %13 = vector.shape_cast %12 : vector<1x1x1x4x128xf32> to vector<4x128xf32>
    %14 = vector.shape_cast %11 : vector<4x128xf32> to vector<1x1x1x4x128xf32>
    tpu.vector_store %arg5[%c0_13, %c0_14, %c0_15, %c0_16, %c0_17], %14 {strides = array<i32>} : memref<1x1x2x4x128xf32, #tpu.memory_space<vmem>>, vector<1x1x1x4x128xf32>,
    %c0_18 = arith.constant 0 : index
    %c0_19 = arith.constant 0 : index
    %c1 = arith.constant 1 : index
    %c0_20 = arith.constant 0 : index
    %c0_21 = arith.constant 0 : index
    %15 = vector.load %arg5[%c0_18, %c0_19, %c1, %c0_20, %c0_21] : memref<1x1x2x4x128xf32, #tpu.memory_space<vmem>>, vector<1x1x1x4x128xf32>
    %16 = vector.shape_cast %15 : vector<1x1x1x4x128xf32> to vector<4x128xf32>
    %17 = arith.addf %4, %6 : vector<4x2x128xf32>
    %cst_22 = arith.constant dense<0.000000e+00> : vector<4x128xf32>
    %18 = vector.multi_reduction <add>, %17, %cst_22 [1] : vector<4x2x128xf32> to vector<4x128xf32>
    %19 = arith.addf %16, %18 : vector<4x128xf32>
    %c0_23 = arith.constant 0 : index
    %c0_24 = arith.constant 0 : index
    %c1_25 = arith.constant 1 : index
    %c0_26 = arith.constant 0 : index
    %c0_27 = arith.constant 0 : index
    %20 = vector.load %arg5[%c0_23, %c0_24, %c1_25, %c0_26, %c0_27] : memref<1x1x2x4x128xf32, #tpu.memory_space<vmem>>, vector<1x1x1x4x128xf32>
    %21 = vector.shape_cast %20 : vector<1x1x1x4x128xf32> to vector<4x128xf32>
    %22 = vector.shape_cast %19 : vector<4x128xf32> to vector<1x1x1x4x128xf32>
    tpu.vector_store %arg5[%c0_23, %c0_24, %c1_25, %c0_26, %c0_27], %22 {strides = array<i32>} : memref<1x1x2x4x128xf32, #tpu.memory_space<vmem>>, vector<1x1x1x4x128xf32>,
    return
  }
  func.func @transform_0(%arg0: i32, %arg1: i32, %arg2: i32) -> (i32, i32, i32, i32) {
    %c1_i32 = arith.constant 1 : i32
    %0 = arith.muli %arg0, %c1_i32 : i32
    %1 = arith.addi %0, %arg2 : i32
    %c0_i32 = arith.constant 0 : i32
    %c0_i32_0 = arith.constant 0 : i32
    %c0_i32_1 = arith.constant 0 : i32
    return %arg1, %c0_i32, %1, %c0_i32_0 : i32, i32, i32, i32
  }
  func.func @transform_1(%arg0: i32, %arg1: i32, %arg2: i32) -> (i32, i32, i32, i32) {
    %c1_i32 = arith.constant 1 : i32
    %0 = arith.muli %arg0, %c1_i32 : i32
    %1 = arith.addi %0, %arg2 : i32
    %c0_i32 = arith.constant 0 : i32
    %c0_i32_0 = arith.constant 0 : i32
    %c0_i32_1 = arith.constant 0 : i32
    return %arg1, %c0_i32, %1, %c0_i32_0 : i32, i32, i32, i32
  }
  func.func @transform_2(%arg0: i32, %arg1: i32, %arg2: i32) -> (i32, i32, i32, i32, i32) {
    %c0_i32 = arith.constant 0 : i32
    %c0_i32_0 = arith.constant 0 : i32
    %c0_i32_1 = arith.constant 0 : i32
    %c0_i32_2 = arith.constant 0 : i32
    return %arg0, %arg1, %c0_i32, %c0_i32_0, %c0_i32_1 : i32, i32, i32, i32, i32
  }
}

</mosaic_0001>

<llo_original>
// kernel: tpu_custom_call.1
$region0: #{tpu_custom_call.1}
  #allocation0 [shape = 'u32[]', space=smem, size = 0x4, offset = 0x4, fixed_abs, tag = 'smem constant byte address 0x4 - core index']
  #allocation1 [shape = 'u32[144,128]{1,0:T(1,128)}', space=vmem, size = 0x12000, scoped, tag = 'internal scratch']
  %s0 = inlined_call_operand.hbm [shape: f32[2,4,2,128], index: 0, kind: input, shape index: {}]
  %s1 = inlined_call_operand.hbm [shape: f32[2,4,2,128], index: 1, kind: input, shape index: {}]
  %s2 = inlined_call_operand.hbm [shape: f32[1,2,2,4,128], index: 2, kind: output, shape index: {}]
  %s3 = sld [smem:[#allocation0]]
  $region53: #{tpu_custom_call.1} parent=0
    _
  %s5 = ssub.s32 1, %s3
  %s6 = scalar_select 0, %s5, %s3
  $region1: #{tpu_custom_call.1} parent=0
    #allocation2 [shape = 'u8[8192]{0}', space=vmem, size = 0x2000, scoped, tag = 'input window, operand 0']
    #allocation3 [shape = 's32[2]{0}', space=sflag, size = 0x8, scoped, tag = 'scoped memory for tpu_custom_call.1']
    #allocation4 [shape = 's32[2]{0}', space=sflag, size = 0x8, scoped, tag = 'scoped memory for tpu_custom_call.1']
    #allocation5 [shape = 'u8[8192]{0}', space=vmem, size = 0x2000, scoped, tag = 'input window, operand 1']
    #allocation6 [shape = 's32[2]{0}', space=sflag, size = 0x8, scoped, tag = 'scoped memory for tpu_custom_call.1']
    #allocation7 [shape = 'u8[8192]{0}', space=vmem, size = 0x2000, scoped, tag = 'output window, operand 0']
    %7 = vsyncpa [#allocation3], 0
    %s8 = scalar_lea.sflag [#allocation3], 1
    %9 = vsyncpa %s8, 0
    %10 = vsyncpa [#allocation6], 0
    %s11 = scalar_lea.sflag [#allocation6], 1
    %12 = vsyncpa %s11, 0
    %13 = vsyncpa [#allocation4], 0
    %s14 = scalar_lea.sflag [#allocation4], 1
    %15 = vsyncpa %s14, 0
    loop: start=0, step=1, limit=4
    $region2: #{tpu_custom_call.1} parent=1 // loop_pre_header
      _
    $region3: #{tpu_custom_call.1} parent=1 // loop_header
      %s17 = sphi 0, %s21
      %p18 = scmp.ge.s32.totalorder %s17, 4
      %s24 = sphi 0, %s43
      %s25 = sphi 0, %s39
      %s26 = sphi 0, %s35
      %s27 = sphi 0, %s24
      %s28 = sphi 0, %s25
      %s29 = sphi 0, %s26
      %s30 = sphi 0, %s27
      %s31 = sphi 0, %s28
      %s32 = sphi 0, %s29
      %s50 = sphi 0, %s52
      %s53 = sphi 0, %s50
      %s54 = sphi 0, %s53
      %s70 = sphi 0, %s54
      %s80 = sphi 0, %s82
      %s83 = sphi 0, %s80
      %s84 = sphi 0, %s83
      %s100 = sphi 0, %s84
      %s108 = sphi 0, %s110
      %s111 = sphi 0, %s108
      %s112 = sphi 0, %s111
      %s128 = sphi 0, %s112
    $region4: #{tpu_custom_call.1} parent=1 // loop_header_branch
      %20 = sbr.rel (%p18) target = $region8
    $region5: #{tpu_custom_call.1} parent=1 // loop_body
      %s22 = ssub.s32 %s17, 1
      %s23 = ssub.s32 %s17, 2
      %s33 = sadd.s32 1, %s26
      %p34 = scmp.ge.s32.totalorder %s33, 1
      %s35 = scalar_select %p34, 0, %s33
      %s36 = sadd.s32 1, %s25
      %s37 = scalar_select %p34, %s36, %s25
      %p38 = scmp.ge.s32.totalorder %s37, 2
      %s39 = scalar_select %p38, 0, %s37
      %s40 = sadd.s32 1, %s24
      %s41 = scalar_select %p38, %s40, %s24
      %p42 = scmp.ge.s32.totalorder %s41, 1
      %s43 = scalar_select %p42, 0, %s41
      %s44 = sadd.s32 %s24, %s26
      %s45 = sadd.s32 %s43, %s35
      %s46 = ssub.s32 %s25, %s39
      %s47 = ssub.s32 %s44, %s45
      %s48 = sor.u32 %s46, %s47
      %p49 = scmp.eq.s32.totalorder %s48, 0
      %s51 = sadd.s32 %s50, 1
      %s52 = scalar_select %p49, %s50, %s51
      %p55 = pneg %p49
      %p56 = scmp.eq.s32.totalorder %s17, 1
      %p57 = por %p55, %p56
      %p58 = scmp.ne.s32.totalorder %s50, %s53
      %p59 = scmp.eq.s32.totalorder %s17, 0
      %p60 = por %p58, %p59
      %p61 = scmp.ne.s32.totalorder %s50, %s53
      %p62 = scmp.eq.s32.totalorder %s22, 1
      %p63 = por %p61, %p62
      %p64 = scmp.ne.s32.totalorder %s53, %s54
      %p65 = scmp.eq.s32.totalorder %s22, 0
      %p66 = por %p64, %p65
      %p67 = scmp.ne.s32.totalorder %s53, %s54
      %p68 = scmp.eq.s32.totalorder %s23, 1
      %p69 = por %p67, %p68
      %p71 = scmp.ne.s32.totalorder %s54, %s70
      %p72 = scmp.eq.s32.totalorder %s23, 0
      %p73 = por %p71, %p72
      %s74 = sadd.s32 %s24, %s26
      %s75 = sadd.s32 %s43, %s35
      %s76 = ssub.s32 %s25, %s39
      %s77 = ssub.s32 %s74, %s75
      %s78 = sor.u32 %s76, %s77
      %p79 = scmp.eq.s32.totalorder %s78, 0
      %s81 = sadd.s32 %s80, 1
      %s82 = scalar_select %p79, %s80, %s81
      %p85 = pneg %p79
      %p86 = scmp.eq.s32.totalorder %s17, 1
      %p87 = por %p85, %p86
      %p88 = scmp.ne.s32.totalorder %s80, %s83
      %p89 = scmp.eq.s32.totalorder %s17, 0
      %p90 = por %p88, %p89
      %p91 = scmp.ne.s32.totalorder %s80, %s83
      %p92 = scmp.eq.s32.totalorder %s22, 1
      %p93 = por %p91, %p92
      %p94 = scmp.ne.s32.totalorder %s83, %s84
      %p95 = scmp.eq.s32.totalorder %s22, 0
      %p96 = por %p94, %p95
      %p97 = scmp.ne.s32.totalorder %s83, %s84
      %p98 = scmp.eq.s32.totalorder %s23, 1
      %p99 = por %p97, %p98
      %p101 = scmp.ne.s32.totalorder %s84, %s100
      %p102 = scmp.eq.s32.totalorder %s23, 0
      %p103 = por %p101, %p102
      %s104 = ssub.s32 %s24, %s43
      %s105 = ssub.s32 %s25, %s39
      %s106 = sor.u32 %s104, %s105
      %p107 = scmp.eq.s32.totalorder %s106, 0
      %s109 = sadd.s32 %s108, 1
      %s110 = scalar_select %p107, %s108, %s109
      %p113 = pneg %p107
      %p114 = scmp.eq.s32.totalorder %s17, 1
      %p115 = por %p113, %p114
      %p116 = scmp.ne.s32.totalorder %s108, %s111
      %p117 = scmp.eq.s32.totalorder %s17, 0
      %p118 = por %p116, %p117
      %p119 = scmp.ne.s32.totalorder %s108, %s111
      %p120 = scmp.eq.s32.totalorder %s22, 1
      %p121 = por %p119, %p120
      %p122 = scmp.ne.s32.totalorder %s111, %s112
      %p123 = scmp.eq.s32.totalorder %s22, 0
      %p124 = por %p122, %p123
      %p125 = scmp.ne.s32.totalorder %s111, %s112
      %p126 = scmp.eq.s32.totalorder %s23, 1
      %p127 = por %p125, %p126
      %p129 = scmp.ne.s32.totalorder %s112, %s128
      %p130 = scmp.eq.s32.totalorder %s23, 0
      %p131 = por %p129, %p130
      %p132 = scmp.le.s32.totalorder 1, %s17
      %p133 = scmp.lt.s32.totalorder %s17, 3
      %p134 = pnand %p132, %p133
      %p135 = pneg %p134
      // Predicated region
      $region9: #{tpu_custom_call.1} parent=5 // pred_check
        _
      $region10: #{tpu_custom_call.1} parent=5 // pred_check_branch
        %137 = sbr.rel (%p134) target = $region12
      $region11: #{tpu_custom_call.1} parent=5 // pred_region
        %s138 = ssub.s32 %s17, 1
      $region12: #{tpu_custom_call.1} parent=5 // pred_fallthru
        _
      %p139 = scmp.lt.s32.totalorder %s17, 2
      // Predicated region
      $region13: #{tpu_custom_call.1} parent=5 // pred_check
        %p140 = pneg %p139
      $region14: #{tpu_custom_call.1} parent=5 // pred_check_branch
        %142 = sbr.rel (%p140) target = $region16
      $region15: #{tpu_custom_call.1} parent=5 // pred_region
        // Predicated region
        $region17: #{tpu_custom_call.1} parent=15 // pred_check
          %p143 = pneg %p60
        $region18: #{tpu_custom_call.1} parent=15 // pred_check_branch
          %145 = sbr.rel (%p143) target = $region20
        $region19: #{tpu_custom_call.1} parent=15 // pred_region
          %s146 = sand.u32 %s50, 1
          %s147 = scalar_lea.sflag [#allocation3], %s146
          %s148 = sand.u32 %s50, 1
          %s149 = smul.addr %s148, 8
          %s150 = scalar_lea.vmem [#allocation2], %s149
          %s151 = sadd.s32 %s24, %s26
          %s153 = ssub.s32 128, 128
          %154 = vsyncadd %s147, %s153
          %s155 = smul.addr %s25, 4
          %s156 = sadd.s32 %s151, %s155
          %s157 = smul.addr %s156, 32
          %s158 = scalar_lea.hbm %s0, %s157
          %s159 = sshll.u32 %s150, 4
          %s160 = int_to_ptr.vmem [resolvable:$true] %s159
          %165 = dma.hbm_to_vmem [thread:$0]  %s158, 128, %s160, %s147, 32, 32, 2
        $region20: #{tpu_custom_call.1} parent=15 // pred_fallthru
          _
        // Predicated region
        $region21: #{tpu_custom_call.1} parent=15 // pred_check
          %p166 = pneg %p90
        $region22: #{tpu_custom_call.1} parent=15 // pred_check_branch
          %168 = sbr.rel (%p166) target = $region24
        $region23: #{tpu_custom_call.1} parent=15 // pred_region
          %s169 = sand.u32 %s80, 1
          %s170 = scalar_lea.sflag [#allocation6], %s169
          %s171 = sand.u32 %s80, 1
          %s172 = smul.addr %s171, 8
          %s173 = scalar_lea.vmem [#allocation5], %s172
          %s174 = sadd.s32 %s24, %s26
          %s176 = ssub.s32 128, 128
          %177 = vsyncadd %s170, %s176
          %s178 = smul.addr %s25, 4
          %s179 = sadd.s32 %s174, %s178
          %s180 = smul.addr %s179, 32
          %s181 = scalar_lea.hbm %s1, %s180
          %s182 = sshll.u32 %s173, 4
          %s183 = int_to_ptr.vmem [resolvable:$true] %s182
          %188 = dma.hbm_to_vmem [thread:$0]  %s181, 128, %s183, %s170, 32, 32, 2
        $region24: #{tpu_custom_call.1} parent=15 // pred_fallthru
          _
      $region16: #{tpu_custom_call.1} parent=5 // pred_fallthru
        _
      %p189 = scmp.le.s32.totalorder 1, %s17
      %p190 = scmp.lt.s32.totalorder %s17, 3
      %p191 = pnand %p189, %p190
      %p192 = pneg %p191
      // Predicated region
      $region25: #{tpu_custom_call.1} parent=5 // pred_check
        _
      $region26: #{tpu_custom_call.1} parent=5 // pred_check_branch
        %194 = sbr.rel (%p191) target = $region28
      $region27: #{tpu_custom_call.1} parent=5 // pred_region
        %s195 = ssub.s32 %s17, 1
        %s196 = sand.u32 %s53, 1
        %s197 = scalar_lea.sflag [#allocation3], %s196
        %s198 = sand.u32 %s53, 1
        %s199 = smul.addr %s198, 8
        %s200 = scalar_lea.vmem [#allocation2], %s199
        // Predicated region
        $region29: #{tpu_custom_call.1} parent=27 // pred_check
          %p201 = pneg %p66
        $region30: #{tpu_custom_call.1} parent=27 // pred_check_branch
          %203 = sbr.rel (%p201) target = $region32
        $region31: #{tpu_custom_call.1} parent=27 // pred_region
          %204 = dma.done %s197, 128
        $region32: #{tpu_custom_call.1} parent=27 // pred_fallthru
          _
        %s205 = sand.u32 %s83, 1
        %s206 = scalar_lea.sflag [#allocation6], %s205
        %s207 = sand.u32 %s83, 1
        %s208 = smul.addr %s207, 8
        %s209 = scalar_lea.vmem [#allocation5], %s208
        // Predicated region
        $region33: #{tpu_custom_call.1} parent=27 // pred_check
          %p210 = pneg %p96
        $region34: #{tpu_custom_call.1} parent=27 // pred_check_branch
          %212 = sbr.rel (%p210) target = $region36
        $region35: #{tpu_custom_call.1} parent=27 // pred_region
          %213 = dma.done %s206, 128
        $region36: #{tpu_custom_call.1} parent=27 // pred_fallthru
          _
        %s214 = sand.u32 %s53, 1
        %s215 = scalar_lea.sflag [#allocation3], %s214
        %s216 = sand.u32 %s53, 1
        %s217 = smul.addr %s216, 8
        %s218 = scalar_lea.vmem [#allocation2], %s217
        %p219 = pneg %p66
        %p220 = pneg %p63
        %s221 = sand.u32 %s83, 1
        %s222 = scalar_lea.sflag [#allocation6], %s221
        %s223 = sand.u32 %s83, 1
        %s224 = smul.addr %s223, 8
        %s225 = scalar_lea.vmem [#allocation5], %s224
        %p226 = pneg %p96
        %p227 = pneg %p93
        %p228 = pneg %p124
        %p229 = pneg %p121
        %s230 = sand.u32 %s111, 1
        %s231 = scalar_lea.sflag [#allocation4], %s230
        %s232 = sand.u32 %s111, 1
        %s233 = smul.addr %s232, 8
        %s234 = scalar_lea.vmem [#allocation7], %s233
        %s235 = sadd.s32 %s27, %s29
        %s236 = sadd.s32 %s27, %s29
        %p237 = scmp.eq.s32.totalorder %s29, 0
        // Predicated region
        $region37: #{tpu_custom_call.1} parent=27 // pred_check
          %p238 = pneg %p237
        $region38: #{tpu_custom_call.1} parent=27 // pred_check_branch
          %240 = sbr.rel (%p238) target = $region40
        $region39: #{tpu_custom_call.1} parent=27 // pred_region
          %241 = vst [vmem:[%s234] sm:$0xf] 0.0
          %242 = vst [vmem:[%s234 + $0x4] sm:$0xf] 0.0
        $region40: #{tpu_custom_call.1} parent=27 // pred_fallthru
          _
        %v243 = vld [vmem:[%s200] sm:$0x3]
        %v244 = vld [vmem:[%s200 + $0x2] sm:$0x3]
        %v245 = vld [vmem:[%s200 + $0x4] sm:$0x3]
        %v246 = vld [vmem:[%s200 + $0x6] sm:$0x3]
        %v247 = vld [vmem:[%s209] sm:$0x3]
        %v248 = vld [vmem:[%s209 + $0x2] sm:$0x3]
        %v249 = vld [vmem:[%s209 + $0x4] sm:$0x3]
        %v250 = vld [vmem:[%s209 + $0x6] sm:$0x3]
        %v251 = vld [vmem:[%s234] sm:$0xf]
        %v252 = vmul.f32 %v243, %v247
        %v253 = vmul.f32 %v244, %v248
        %v254 = vmul.f32 %v245, %v249
        %v255 = vmul.f32 %v246, %v250
        %vm256 = vcmask 1041408
        %v257 = vsel %vm256, %v252, 0.0
        %v258 = vrot.slane %v257, 4
        %v259 = vadd.f32 %v257, %v258
        %v260 = vrot.slane %v259, 2
        %v261 = vadd.f32 %v259, %v260
        %v262 = vrot.slane %v261, 1
        %v263 = vadd.f32 %v261, %v262
        %v264 = vsel %vm256, %v253, 0.0
        %v265 = vrot.slane %v264, 4
        %v266 = vadd.f32 %v264, %v265
        %v267 = vrot.slane %v266, 2
        %v268 = vadd.f32 %v266, %v267
        %v269 = vrot.slane %v268, 1
        %v270 = vadd.f32 %v268, %v269
        %v271 = vsel %vm256, %v254, 0.0
        %v272 = vrot.slane %v271, 4
        %v273 = vadd.f32 %v271, %v272
        %v274 = vrot.slane %v273, 2
        %v275 = vadd.f32 %v273, %v274
        %v276 = vrot.slane %v275, 1
        %v277 = vadd.f32 %v275, %v276
        %v278 = vsel %vm256, %v255, 0.0
        %v279 = vrot.slane %v278, 4
        %v280 = vadd.f32 %v278, %v279
        %v281 = vrot.slane %v280, 2
        %v282 = vadd.f32 %v280, %v281
        %v283 = vrot.slane %v282, 1
        %v284 = vadd.f32 %v282, %v283
        %vm289 = vcmask 1041409
        %v290 = vsel %vm289, %v270, %v263
        %vm291 = vcmask 1042434
        %v292 = vsel %vm291, %v277, %v290
        %vm293 = vcmask 1043459
        %v294 = vsel %vm293, %v284, %v292
        %v296 = vadd.f32 %v251, %v294
        %297 = vst [vmem:[%s234] sm:$0xf] %v296
        %s298 = scalar_lea.vmem %s234, 4 [#allocation7]
        %v299 = vld [vmem:[%s298] sm:$0xf]
        %v300 = vadd.f32 %v243, %v247
        %v301 = vadd.f32 %v244, %v248
        %v302 = vadd.f32 %v245, %v249
        %v303 = vadd.f32 %v246, %v250
        %v304 = vsel %vm256, %v300, 0.0
        %v305 = vrot.slane %v304, 4
        %v306 = vadd.f32 %v304, %v305
        %v307 = vrot.slane %v306, 2
        %v308 = vadd.f32 %v306, %v307
        %v309 = vrot.slane %v308, 1
        %v310 = vadd.f32 %v308, %v309
        %v311 = vsel %vm256, %v301, 0.0
        %v312 = vrot.slane %v311, 4
        %v313 = vadd.f32 %v311, %v312
        %v314 = vrot.slane %v313, 2
        %v315 = vadd.f32 %v313, %v314
        %v316 = vrot.slane %v315, 1
        %v317 = vadd.f32 %v315, %v316
        %v318 = vsel %vm256, %v302, 0.0
        %v319 = vrot.slane %v318, 4
        %v320 = vadd.f32 %v318, %v319
        %v321 = vrot.slane %v320, 2
        %v322 = vadd.f32 %v320, %v321
        %v323 = vrot.slane %v322, 1
        %v324 = vadd.f32 %v322, %v323
        %v325 = vsel %vm256, %v303, 0.0
        %v326 = vrot.slane %v325, 4
        %v327 = vadd.f32 %v325, %v326
        %v328 = vrot.slane %v327, 2
        %v329 = vadd.f32 %v327, %v328
        %v330 = vrot.slane %v329, 1
        %v331 = vadd.f32 %v329, %v330
        %v336 = vsel %vm289, %v317, %v310
        %v337 = vsel %vm291, %v324, %v336
        %v338 = vsel %vm293, %v331, %v337
        %v340 = vadd.f32 %v299, %v338
        %341 = vst [vmem:[%s298] sm:$0xf] %v340
        %s342 = sand.u32 %s111, 1
        %s343 = scalar_lea.sflag [#allocation4], %s342
        %s344 = sand.u32 %s111, 1
        %s345 = smul.addr %s344, 8
        %s346 = scalar_lea.vmem [#allocation7], %s345
        // Predicated region
        $region41: #{tpu_custom_call.1} parent=27 // pred_check
          %p347 = pneg %p121
        $region42: #{tpu_custom_call.1} parent=27 // pred_check_branch
          %349 = sbr.rel (%p347) target = $region44
        $region43: #{tpu_custom_call.1} parent=27 // pred_region
          %s351 = ssub.s32 128, 128
          %352 = vsyncadd %s343, %s351
          %s353 = smul.addr %s28, 2
          %s354 = smul.addr %s27, 4
          %s355 = sadd.s32 %s353, %s354
          %s356 = smul.addr %s355, 64
          %s357 = scalar_lea.hbm %s2, %s356
          %s358 = sshll.u32 %s346, 4
          %s359 = int_to_ptr.vmem [resolvable:$true] %s358
          %364 = dma.vmem_to_hbm [thread:$0]  %s359, 128, %s357, %s343, 64, 64, 4
        $region44: #{tpu_custom_call.1} parent=27 // pred_fallthru
          _
      $region28: #{tpu_custom_call.1} parent=5 // pred_fallthru
        _
      %p365 = scmp.le.s32.totalorder 2, %s17
      // Predicated region
      $region45: #{tpu_custom_call.1} parent=5 // pred_check
        %p366 = pneg %p365
      $region46: #{tpu_custom_call.1} parent=5 // pred_check_branch
        %368 = sbr.rel (%p366) target = $region48
      $region47: #{tpu_custom_call.1} parent=5 // pred_region
        %s369 = ssub.s32 %s17, 2
        // Predicated region
        $region49: #{tpu_custom_call.1} parent=47 // pred_check
          %p370 = pneg %p127
        $region50: #{tpu_custom_call.1} parent=47 // pred_check_branch
          %372 = sbr.rel (%p370) target = $region52
        $region51: #{tpu_custom_call.1} parent=47 // pred_region
          %s373 = sand.u32 %s112, 1
          %s374 = scalar_lea.sflag [#allocation4], %s373
          %s375 = sand.u32 %s112, 1
          %s376 = smul.addr %s375, 8
          %s377 = scalar_lea.vmem [#allocation7], %s376
          %378 = dma.done %s374, 128
        $region52: #{tpu_custom_call.1} parent=47 // pred_fallthru
          _
      $region48: #{tpu_custom_call.1} parent=5 // pred_fallthru
        _
    $region6: #{tpu_custom_call.1} parent=1 // loop_footer
      %s21 = sadd.s32 1, %s17
    $region7: #{tpu_custom_call.1} parent=1 // loop_footer_branch
      %16 = sbr.rel target = $region3
    $region8: #{tpu_custom_call.1} parent=1 // loop_exit
      _
    %379 = vsyncpa [#allocation3], 1
    %s380 = scalar_lea.sflag [#allocation3], 1
    %381 = vsyncpa %s380, 1
    %382 = vsyncpa [#allocation6], 1
    %s383 = scalar_lea.sflag [#allocation6], 1
    %384 = vsyncpa %s383, 1
    %385 = vsyncpa [#allocation4], 1
    %s386 = scalar_lea.sflag [#allocation4], 1
    %387 = vsyncpa %s386, 1

</llo_original>
